<compile_context>
chip_gen: v5e
topology: v5e:2x2
jax: 0.10.0
libtpu: 0.0.40
codegen_flags: <defaults>
</compile_context>

<pallas_src>
import math
import functools

import jax
import jax.numpy as jnp
from jax import lax
from jax.experimental import pallas as pl
from jax.experimental.pallas import tpu as pltpu


# ----------------------------- config (MicroLMConfig subset) -----------------
BATCH = 2
SEQ = 16
DIM = 64
N_HEADS = 4
N_KV_HEADS = 2
HEAD_DIM = DIM // N_HEADS          # 16
N_REP = N_HEADS // N_KV_HEADS      # 2
ROPE_THETA = 10000.0
# dropout = 0.0  -> attn_dropout / resid_dropout are identity (eval semantics)


# ----------------------------- helpers ---------------------------------------
def _shift_cols_up(x):
    """out[:, j] = x[:, j + 1]; wrapped last column is masked by zero coeffs."""
    return jnp.concatenate([x[:, 1:], x[:, :1]], axis=1)


def _shift_cols_down(x):
    """out[:, j] = x[:, j - 1]; wrapped first column is masked by zero coeffs."""
    return jnp.concatenate([x[:, -1:], x[:, :-1]], axis=1)


# ----------------------------- Pallas kernel ---------------------------------
def _attention_kernel(x_ref, wqkv_ref, wo_ref, c_ref, a_ref, b_ref,
                      o_ref, acc_ref, *, bb, seq, n_heads, n_kv_heads, head_dim):
    n_rep = n_heads // n_kv_heads
    q_w = n_heads * head_dim                # 64
    kv_w = n_kv_heads * head_dim            # 32

    x = x_ref[...]                                               # [bb*S, dim]

    # ---- fused Q/K/V projection: one lane-dense (128-wide) MXU matmul -------
    qkv = jnp.dot(x, wqkv_ref[...], preferred_element_type=jnp.float32)

    # ---- full-width rotary (q & k rotated, v passes through) ----------------
    rot = (qkv * c_ref[...]
           + _shift_cols_up(qkv) * a_ref[...]
           + _shift_cols_down(qkv) * b_ref[...])                 # [bb*S, 128]

    # ---- causal mask for pair-stacked scores [n_rep*S, S] -------------------
    qpos = lax.rem(lax.broadcasted_iota(jnp.int32, (n_rep * seq, seq), 0),
                   jnp.int32(seq))
    kpos = lax.broadcasted_iota(jnp.int32, (n_rep * seq, seq), 1)
    causal = kpos <= qpos
    neg_big = jnp.float32(-1e30)   # finite (avoids inf-inf NaN on masked rows)

    # ---- GQA attention: per batch, per KV head, both query heads at once ----
    for b in range(bb):                         # static unroll (bb in {1, B})
        r0 = b * seq
        rowblk = rot[r0:r0 + seq, :]            # [S, 128]
        for kvh in range(n_kv_heads):
            kh = rowblk[:, q_w + kvh * head_dim:
                           q_w + (kvh + 1) * head_dim]            # [S, D]
            vh = rowblk[:, q_w + kv_w + kvh * head_dim:
                           q_w + kv_w + (kvh + 1) * head_dim]     # [S, D]
            # stack the n_rep query heads that share this KV head along rows
            q2 = jnp.concatenate(
                [rowblk[:, (kvh * n_rep + r) * head_dim:
                           (kvh * n_rep + r + 1) * head_dim]
                 for r in range(n_rep)], axis=0)                  # [n_rep*S, D]

            # scores (1/sqrt(D) already folded into Wq)
            s = lax.dot_general(q2, kh, (((1,), (1,)), ((), ())),
                                preferred_element_type=jnp.float32)
            s = jnp.where(causal, s, neg_big)
            m = jnp.max(s, axis=-1, keepdims=True)
            p = jnp.exp(s - m)
            d = jnp.sum(p, axis=-1, keepdims=True)
            inv = pl.reciprocal(d, approx=True)     # EUP slot
            inv = inv * (2.0 - d * inv)             # one Newton step -> ~f32 exact

            o2 = jnp.dot(p, vh, preferred_element_type=jnp.float32) * inv

            # scatter the two head outputs into the scratch at static offsets
            for r in range(n_rep):
                h = kvh * n_rep + r
                acc_ref[pl.ds(r0, seq), pl.ds(h * head_dim, head_dim)] = (
                    o2[r * seq:(r + 1) * seq, :])

    # ---- output projection: single [bb*S,64] x [64,64] matmul ---------------
    o_ref[...] = jnp.dot(acc_ref[...], wo_ref[...],
                         preferred_element_type=jnp.float32).astype(o_ref.dtype)


# ----------------------------- host-side glue --------------------------------
def _rope_coeff_tables(cos, sin, n_heads, n_kv_heads, head_dim, bb):
    """Per-column rotary coefficient tables for the fused [q|k|v] slab.

    rot[:, c] = qkv[:, c]*C[:, c] + qkv[:, c+1]*A[:, c] + qkv[:, c-1]*B[:, c]
    reproduces the interleaved complex rotation on q/k columns and identity on v.
    """
    S, half = cos.shape
    assert 2 * half == head_dim
    cos_i = jnp.repeat(cos, 2, axis=1)                    # [S, D] c0,c0,c1,c1,...
    sin_i = jnp.repeat(sin, 2, axis=1)
    even = (jnp.arange(head_dim) % 2 == 0).astype(cos.dtype)
    a_head = -sin_i * even[None, :]                       # -sin at even cols
    b_head = sin_i * (1.0 - even)[None, :]                # +sin at odd cols

    n_rot_heads = n_heads + n_kv_heads
    v_w = n_kv_heads * head_dim
    ones_v = jnp.ones((S, v_w), cos.dtype)
    zeros_v = jnp.zeros((S, v_w), cos.dtype)
    C = jnp.concatenate([jnp.tile(cos_i, (1, n_rot_heads)), ones_v], axis=1)
    A = jnp.concatenate([jnp.tile(a_head, (1, n_rot_heads)), zeros_v], axis=1)
    B = jnp.concatenate([jnp.tile(b_head, (1, n_rot_heads)), zeros_v], axis=1)
    if bb > 1:
        C = jnp.tile(C, (bb, 1))
        A = jnp.tile(A, (bb, 1))
        B = jnp.tile(B, (bb, 1))
    return C, A, B


def _batch_block(batch):
    """Batch rows per grid step: collapse on single-TC chips, shard on multi-TC."""
    try:
        kind = jax.devices()[0].device_kind.lower()
    except Exception:
        return batch
    single_tc = ("lite" in kind) or ("v5e" in kind) or ("v6e" in kind)
    return batch if single_tc else 1


def attention_forward(x, wq, wk, wv, wo, cos, sin):
    """x: [B, S, dim]; wq/wk/wv/wo: [in, out]; cos/sin: [S, head_dim//2]."""
    B, S, dim = x.shape
    head_dim = dim // N_HEADS
    scale = 1.0 / math.sqrt(head_dim)

    bb = _batch_block(B)
    if B % bb:
        bb = 1
    rows_blk = bb * S

    # Fused QKV weight; fold the 1/sqrt(D) score scale into Wq for free.
    wqkv = jnp.concatenate([wq * scale, wk, wv], axis=1).astype(jnp.float32)
    qkv_w = wqkv.shape[1]

    C, A, Bc = _rope_coeff_tables(cos, sin, N_HEADS, N_KV_HEADS, head_dim, bb)

    x_flat = x.reshape(B * S, dim)

    kernel = functools.partial(_attention_kernel, bb=bb, seq=S,
                               n_heads=N_HEADS, n_kv_heads=N_KV_HEADS,
                               head_dim=head_dim)

    # TODO(synk): past_key_value / use_cache incremental-decode path is not
    # implemented in the kernel (only the full-sequence causal forward).

    out_flat = pl.pallas_call(
        kernel,
        out_shape=jax.ShapeDtypeStruct((B * S, dim), x.dtype),
        grid_spec=pltpu.PrefetchScalarGridSpec(
            num_scalar_prefetch=0,
            grid=(B // bb,),
            in_specs=[
                pl.BlockSpec((rows_blk, dim), lambda i: (i, 0)),       # x
                pl.BlockSpec((dim, qkv_w), lambda i: (0, 0)),          # W_qkv
                pl.BlockSpec(wo.shape, lambda i: (0, 0)),              # W_o
                pl.BlockSpec((rows_blk, qkv_w), lambda i: (0, 0)),     # rope cos
                pl.BlockSpec((rows_blk, qkv_w), lambda i: (0, 0)),     # rope -sin
                pl.BlockSpec((rows_blk, qkv_w), lambda i: (0, 0)),     # rope +sin
            ],
            out_specs=pl.BlockSpec((rows_blk, dim), lambda i: (i, 0)),
            scratch_shapes=[pltpu.VMEM((rows_blk, N_HEADS * head_dim),
                                       jnp.float32)],
        ),
        compiler_params=pltpu.CompilerParams(
            dimension_semantics=("parallel",)),
    )(x_flat, wqkv, wo, C, A, Bc)

    return out_flat.reshape(B, S, dim)


# ----------------------------- pure-JAX reference (PyTorch semantics) --------
def reference_forward(x, wq, wk, wv, wo, cos, sin):
    B, S, _ = x.shape
    q = (x @ wq).reshape(B, S, N_HEADS, HEAD_DIM)
    k = (x @ wk).reshape(B, S, N_KV_HEADS, HEAD_DIM)
    v = (x @ wv).reshape(B, S, N_KV_HEADS, HEAD_DIM)

    def rot(t):  # interleaved complex-pair rotation, exactly like apply_rotary_emb
        tr = t.reshape(*t.shape[:-1], HEAD_DIM // 2, 2)
        te, to = tr[..., 0], tr[..., 1]
        c = cos[None, :, None, :]
        s = sin[None, :, None, :]
        return jnp.stack([te * c - to * s, te * s + to * c], axis=-1).reshape(t.shape)

    q, k = rot(q), rot(k)
    k = jnp.repeat(k, N_REP, axis=2)   # repeat_kv
    v = jnp.repeat(v, N_REP, axis=2)
    q = q.transpose(0, 2, 1, 3)
    k = k.transpose(0, 2, 1, 3)
    v = v.transpose(0, 2, 1, 3)
    scores = (q @ k.transpose(0, 1, 3, 2)) / math.sqrt(HEAD_DIM)
    mask = jnp.triu(jnp.full((S, S), -jnp.inf, dtype=jnp.float32), k=1)
    scores = scores + mask[None, None]
    p = jax.nn.softmax(scores.astype(jnp.float32), axis=-1)
    out = (p @ v).transpose(0, 2, 1, 3).reshape(B, S, -1)
    return out @ wo


# ----------------------------- main -------------------------------------------
if __name__ == "__main__":
    key = jax.random.PRNGKey(0)
    kx, kq, kk, kv, ko = jax.random.split(key, 5)

    x = jax.random.normal(kx, (BATCH, SEQ, DIM), dtype=jnp.float32)
    # nn.Linear(dim, out, bias=False) stored here as [in, out] (x @ W)
    wq = jax.random.normal(kq, (DIM, N_HEADS * HEAD_DIM), dtype=jnp.float32) * 0.05
    wk = jax.random.normal(kk, (DIM, N_KV_HEADS * HEAD_DIM), dtype=jnp.float32) * 0.05
    wv = jax.random.normal(kv, (DIM, N_KV_HEADS * HEAD_DIM), dtype=jnp.float32) * 0.05
    wo = jax.random.normal(ko, (N_HEADS * HEAD_DIM, DIM), dtype=jnp.float32) * 0.05

    # pos_cis = cos + i*sin, shape [S, head_dim//2]
    inv_freq = 1.0 / (ROPE_THETA ** (jnp.arange(0, HEAD_DIM, 2, dtype=jnp.float32)
                                     / HEAD_DIM))
    angles = jnp.arange(SEQ, dtype=jnp.float32)[:, None] * inv_freq[None, :]
    cos, sin = jnp.cos(angles), jnp.sin(angles)

    out = attention_forward(x, wq, wk, wv, wo, cos, sin)
    out = jax.block_until_ready(out)

    ref = reference_forward(x, wq, wk, wv, wo, cos, sin)
    assert out.shape == (BATCH, SEQ, DIM)
    assert jnp.allclose(out, ref, atol=1e-4, rtol=1e-4), (
        f"max abs err {jnp.max(jnp.abs(out - ref))}")

    print("KERNEL_OK")
</pallas_src>

<mosaic_0001>
module attributes {stable_mosaic.version = 11 : i64} {
  func.func @_attention_kernel(%arg0: i32, %arg1: memref<16x64xf32, #tpu.memory_space<vmem>>, %arg2: memref<64x128xf32, #tpu.memory_space<vmem>>, %arg3: memref<64x64xf32, #tpu.memory_space<vmem>>, %arg4: memref<16x128xf32, #tpu.memory_space<vmem>>, %arg5: memref<16x128xf32, #tpu.memory_space<vmem>>, %arg6: memref<16x128xf32, #tpu.memory_space<vmem>>, %arg7: memref<16x64xf32, #tpu.memory_space<vmem>>, %arg8: memref<16x64xf32, #tpu.memory_space<vmem>>) attributes {dimension_semantics = [#tpu.dimension_semantics<parallel>], iteration_bounds = array<i64: 2>, scalar_prefetch = 0 : i64, scratch_operands = 1 : i64, tpu.core_type = #tpu.core_type<tc>, window_params = [{transform_indices = @transform_0, window_bounds = array<i64: 16, 64>}, {pipeline_mode = #tpu.pipeline_mode<synchronous>, transform_indices = @transform_1, window_bounds = array<i64: 64, 128>}, {pipeline_mode = #tpu.pipeline_mode<synchronous>, transform_indices = @transform_2, window_bounds = array<i64: 64, 64>}, {pipeline_mode = #tpu.pipeline_mode<synchronous>, transform_indices = @transform_3, window_bounds = array<i64: 16, 128>}, {pipeline_mode = #tpu.pipeline_mode<synchronous>, transform_indices = @transform_4, window_bounds = array<i64: 16, 128>}, {pipeline_mode = #tpu.pipeline_mode<synchronous>, transform_indices = @transform_5, window_bounds = array<i64: 16, 128>}, {transform_indices = @transform_6, window_bounds = array<i64: 16, 64>}]} {
    %c0 = arith.constant 0 : index
    %c0_0 = arith.constant 0 : index
    %0 = vector.load %arg1[%c0, %c0_0] : memref<16x64xf32, #tpu.memory_space<vmem>>, vector<16x64xf32>
    %c0_1 = arith.constant 0 : index
    %c0_2 = arith.constant 0 : index
    %1 = vector.load %arg2[%c0_1, %c0_2] : memref<64x128xf32, #tpu.memory_space<vmem>>, vector<64x128xf32>
    %cst = arith.constant dense<0.000000e+00> : vector<16x128xf32>
    %2 = tpu.matmul %0, %1, %cst {dimension_numbers = #tpu.dot_dimension_numbers<[1], [0], [0], [1], [0, 0, 1, 1], [], []>} : vector<16x64xf32>, vector<64x128xf32>, vector<16x128xf32> -> vector<16x128xf32>
    %c0_3 = arith.constant 0 : index
    %c0_4 = arith.constant 0 : index
    %3 = vector.load %arg4[%c0_3, %c0_4] : memref<16x128xf32, #tpu.memory_space<vmem>>, vector<16x128xf32>
    %4 = arith.mulf %2, %3 : vector<16x128xf32>
    %5 = vector.extract_strided_slice %2 {offsets = [0, 1], sizes = [16, 127], strides = [1, 1]} : vector<16x128xf32> to vector<16x127xf32>
    %6 = vector.extract_strided_slice %2 {offsets = [0, 0], sizes = [16, 1], strides = [1, 1]} : vector<16x128xf32> to vector<16x1xf32>
    %7 = tpu.concatenate %5, %6 in 1 : vector<16x127xf32>, vector<16x1xf32> -> vector<16x128xf32>
    %c0_5 = arith.constant 0 : index
    %c0_6 = arith.constant 0 : index
    %8 = vector.load %arg5[%c0_5, %c0_6] : memref<16x128xf32, #tpu.memory_space<vmem>>, vector<16x128xf32>
    %9 = arith.mulf %7, %8 : vector<16x128xf32>
    %10 = arith.addf %4, %9 : vector<16x128xf32>
    %11 = vector.extract_strided_slice %2 {offsets = [0, 127], sizes = [16, 1], strides = [1, 1]} : vector<16x128xf32> to vector<16x1xf32>
    %12 = vector.extract_strided_slice %2 {offsets = [0, 0], sizes = [16, 127], strides = [1, 1]} : vector<16x128xf32> to vector<16x127xf32>
    %13 = tpu.concatenate %11, %12 in 1 : vector<16x1xf32>, vector<16x127xf32> -> vector<16x128xf32>
    %c0_7 = arith.constant 0 : index
    %c0_8 = arith.constant 0 : index
    %14 = vector.load %arg6[%c0_7, %c0_8] : memref<16x128xf32, #tpu.memory_space<vmem>>, vector<16x128xf32>
    %15 = arith.mulf %13, %14 : vector<16x128xf32>
    %16 = arith.addf %10, %15 : vector<16x128xf32>
    %17 = tpu.iota {dimensions = array<i32: 0>} : vector<32x16xi32>
    %c16_i32 = arith.constant 16 : i32
    %18 = vector.broadcast %c16_i32 : i32 to vector<32x16xi32>
    %19 = arith.remsi %17, %18 : vector<32x16xi32>
    %20 = tpu.iota {dimensions = array<i32: 1>} : vector<32x16xi32>
    %21 = arith.cmpi sle, %20, %19 : vector<32x16xi32>
    %22 = vector.extract_strided_slice %16 {offsets = [0, 64], sizes = [16, 16], strides = [1, 1]} : vector<16x128xf32> to vector<16x16xf32>
    %23 = vector.extract_strided_slice %16 {offsets = [0, 96], sizes = [16, 16], strides = [1, 1]} : vector<16x128xf32> to vector<16x16xf32>
    %24 = vector.extract_strided_slice %16 {offsets = [0, 0], sizes = [16, 16], strides = [1, 1]} : vector<16x128xf32> to vector<16x16xf32>
    %25 = vector.extract_strided_slice %16 {offsets = [0, 16], sizes = [16, 16], strides = [1, 1]} : vector<16x128xf32> to vector<16x16xf32>
    %26 = tpu.concatenate %24, %25 in 0 : vector<16x16xf32>, vector<16x16xf32> -> vector<32x16xf32>
    %cst_9 = arith.constant dense<0.000000e+00> : vector<32x16xf32>
    %27 = tpu.matmul %26, %22, %cst_9 {dimension_numbers = #tpu.dot_dimension_numbers<[1], [1], [0], [0], [0, 0, 1, 0], [], []>} : vector<32x16xf32>, vector<16x16xf32>, vector<32x16xf32> -> vector<32x16xf32>
    %cst_10 = arith.constant -1.000000e+30 : f32
    %28 = vector.broadcast %cst_10 : f32 to vector<32x16xf32>
    %29 = arith.select %21, %27, %28 : vector<32x16xi1>, vector<32x16xf32>
    %cst_11 = arith.constant dense<0xFF800000> : vector<32xf32>
    %30 = vector.multi_reduction <maximumf>, %29, %cst_11 [1] : vector<32x16xf32> to vector<32xf32>
    %31 = vector.shape_cast %30 : vector<32xf32> to vector<32x1xf32>
    %32 = vector.broadcast %31 : vector<32x1xf32> to vector<32x16xf32>
    %33 = arith.subf %29, %32 : vector<32x16xf32>
    %34 = math.exp %33 : vector<32x16xf32>
    %cst_12 = arith.constant dense<0.000000e+00> : vector<32xf32>
    %35 = vector.multi_reduction <add>, %34, %cst_12 [1] : vector<32x16xf32> to vector<32xf32>
    %36 = vector.shape_cast %35 : vector<32xf32> to vector<32x1xf32>
    %37 = tpu.reciprocal %36 {approx = true} : vector<32x1xf32> -> vector<32x1xf32>
    %38 = arith.mulf %36, %37 : vector<32x1xf32>
    %cst_13 = arith.constant 2.000000e+00 : f32
    %39 = vector.broadcast %cst_13 : f32 to vector<32x1xf32>
    %40 = arith.subf %39, %38 : vector<32x1xf32>
    %41 = arith.mulf %37, %40 : vector<32x1xf32>
    %cst_14 = arith.constant dense<0.000000e+00> : vector<32x16xf32>
    %42 = tpu.matmul %34, %23, %cst_14 {dimension_numbers = #tpu.dot_dimension_numbers<[1], [0], [0], [1], [0, 0, 1, 1], [], []>} : vector<32x16xf32>, vector<16x16xf32>, vector<32x16xf32> -> vector<32x16xf32>
    %43 = vector.broadcast %41 : vector<32x1xf32> to vector<32x16xf32>
    %44 = arith.mulf %42, %43 : vector<32x16xf32>
    %45 = vector.extract_strided_slice %44 {offsets = [0, 0], sizes = [16, 16], strides = [1, 1]} : vector<32x16xf32> to vector<16x16xf32>
    %c0_15 = arith.constant 0 : index
    %c0_16 = arith.constant 0 : index
    %46 = vector.load %arg8[%c0_15, %c0_16] : memref<16x64xf32, #tpu.memory_space<vmem>>, vector<16x16xf32>
    tpu.vector_store %arg8[%c0_15, %c0_16], %45 {strides = array<i32>} : memref<16x64xf32, #tpu.memory_space<vmem>>, vector<16x16xf32>,
    %47 = vector.extract_strided_slice %44 {offsets = [16, 0], sizes = [16, 16], strides = [1, 1]} : vector<32x16xf32> to vector<16x16xf32>
    %c0_17 = arith.constant 0 : index
    %c16 = arith.constant 16 : index
    %48 = vector.load %arg8[%c0_17, %c16] : memref<16x64xf32, #tpu.memory_space<vmem>>, vector<16x16xf32>
    tpu.vector_store %arg8[%c0_17, %c16], %47 {strides = array<i32>} : memref<16x64xf32, #tpu.memory_space<vmem>>, vector<16x16xf32>,
    %49 = vector.extract_strided_slice %16 {offsets = [0, 80], sizes = [16, 16], strides = [1, 1]} : vector<16x128xf32> to vector<16x16xf32>
    %50 = vector.extract_strided_slice %16 {offsets = [0, 112], sizes = [16, 16], strides = [1, 1]} : vector<16x128xf32> to vector<16x16xf32>
    %51 = vector.extract_strided_slice %16 {offsets = [0, 32], sizes = [16, 16], strides = [1, 1]} : vector<16x128xf32> to vector<16x16xf32>
    %52 = vector.extract_strided_slice %16 {offsets = [0, 48], sizes = [16, 16], strides = [1, 1]} : vector<16x128xf32> to vector<16x16xf32>
    %53 = tpu.concatenate %51, %52 in 0 : vector<16x16xf32>, vector<16x16xf32> -> vector<32x16xf32>
    %cst_18 = arith.constant dense<0.000000e+00> : vector<32x16xf32>
    %54 = tpu.matmul %53, %49, %cst_18 {dimension_numbers = #tpu.dot_dimension_numbers<[1], [1], [0], [0], [0, 0, 1, 0], [], []>} : vector<32x16xf32>, vector<16x16xf32>, vector<32x16xf32> -> vector<32x16xf32>
    %cst_19 = arith.constant -1.000000e+30 : f32
    %55 = vector.broadcast %cst_19 : f32 to vector<32x16xf32>
    %56 = arith.select %21, %54, %55 : vector<32x16xi1>, vector<32x16xf32>
    %cst_20 = arith.constant dense<0xFF800000> : vector<32xf32>
    %57 = vector.multi_reduction <maximumf>, %56, %cst_20 [1] : vector<32x16xf32> to vector<32xf32>
    %58 = vector.shape_cast %57 : vector<32xf32> to vector<32x1xf32>
    %59 = vector.broadcast %58 : vector<32x1xf32> to vector<32x16xf32>
    %60 = arith.subf %56, %59 : vector<32x16xf32>
    %61 = math.exp %60 : vector<32x16xf32>
    %cst_21 = arith.constant dense<0.000000e+00> : vector<32xf32>
    %62 = vector.multi_reduction <add>, %61, %cst_21 [1] : vector<32x16xf32> to vector<32xf32>
    %63 = vector.shape_cast %62 : vector<32xf32> to vector<32x1xf32>
    %64 = tpu.reciprocal %63 {approx = true} : vector<32x1xf32> -> vector<32x1xf32>
    %65 = arith.mulf %63, %64 : vector<32x1xf32>
    %cst_22 = arith.constant 2.000000e+00 : f32
    %66 = vector.broadcast %cst_22 : f32 to vector<32x1xf32>
    %67 = arith.subf %66, %65 : vector<32x1xf32>
    %68 = arith.mulf %64, %67 : vector<32x1xf32>
    %cst_23 = arith.constant dense<0.000000e+00> : vector<32x16xf32>
    %69 = tpu.matmul %61, %50, %cst_23 {dimension_numbers = #tpu.dot_dimension_numbers<[1], [0], [0], [1], [0, 0, 1, 1], [], []>} : vector<32x16xf32>, vector<16x16xf32>, vector<32x16xf32> -> vector<32x16xf32>
    %70 = vector.broadcast %68 : vector<32x1xf32> to vector<32x16xf32>
    %71 = arith.mulf %69, %70 : vector<32x16xf32>
    %72 = vector.extract_strided_slice %71 {offsets = [0, 0], sizes = [16, 16], strides = [1, 1]} : vector<32x16xf32> to vector<16x16xf32>
    %c0_24 = arith.constant 0 : index
    %c32 = arith.constant 32 : index
    %73 = vector.load %arg8[%c0_24, %c32] : memref<16x64xf32, #tpu.memory_space<vmem>>, vector<16x16xf32>
    tpu.vector_store %arg8[%c0_24, %c32], %72 {strides = array<i32>} : memref<16x64xf32, #tpu.memory_space<vmem>>, vector<16x16xf32>,
    %74 = vector.extract_strided_slice %71 {offsets = [16, 0], sizes = [16, 16], strides = [1, 1]} : vector<32x16xf32> to vector<16x16xf32>
    %c0_25 = arith.constant 0 : index
    %c48 = arith.constant 48 : index
    %75 = vector.load %arg8[%c0_25, %c48] : memref<16x64xf32, #tpu.memory_space<vmem>>, vector<16x16xf32>
    tpu.vector_store %arg8[%c0_25, %c48], %74 {strides = array<i32>} : memref<16x64xf32, #tpu.memory_space<vmem>>, vector<16x16xf32>,
    %c0_26 = arith.constant 0 : index
    %c0_27 = arith.constant 0 : index
    %76 = vector.load %arg8[%c0_26, %c0_27] : memref<16x64xf32, #tpu.memory_space<vmem>>, vector<16x64xf32>
    %c0_28 = arith.constant 0 : index
    %c0_29 = arith.constant 0 : index
    %77 = vector.load %arg3[%c0_28, %c0_29] : memref<64x64xf32, #tpu.memory_space<vmem>>, vector<64x64xf32>
    %cst_30 = arith.constant dense<0.000000e+00> : vector<16x64xf32>
    %78 = tpu.matmul %76, %77, %cst_30 {dimension_numbers = #tpu.dot_dimension_numbers<[1], [0], [0], [1], [0, 0, 1, 1], [], []>} : vector<16x64xf32>, vector<64x64xf32>, vector<16x64xf32> -> vector<16x64xf32>
    %c0_31 = arith.constant 0 : index
    %c0_32 = arith.constant 0 : index
    %79 = vector.load %arg7[%c0_31, %c0_32] : memref<16x64xf32, #tpu.memory_space<vmem>>, vector<16x64xf32>
    tpu.vector_store %arg7[%c0_31, %c0_32], %78 {strides = array<i32>} : memref<16x64xf32, #tpu.memory_space<vmem>>, vector<16x64xf32>,
    return
  }
  func.func @transform_0(%arg0: i32) -> (i32, i32) {
    %c0_i32 = arith.constant 0 : i32
    %c0_i32_0 = arith.constant 0 : i32
    return %arg0, %c0_i32 : i32, i32
  }
  func.func @transform_1(%arg0: i32) -> (i32, i32) {
    %c0_i32 = arith.constant 0 : i32
    %c0_i32_0 = arith.constant 0 : i32
    %c0_i32_1 = arith.constant 0 : i32
    return %c0_i32, %c0_i32_0 : i32, i32
  }
  func.func @transform_2(%arg0: i32) -> (i32, i32) {
    %c0_i32 = arith.constant 0 : i32
    %c0_i32_0 = arith.constant 0 : i32
    %c0_i32_1 = arith.constant 0 : i32
    return %c0_i32, %c0_i32_0 : i32, i32
  }
  func.func @transform_3(%arg0: i32) -> (i32, i32) {
    %c0_i32 = arith.constant 0 : i32
    %c0_i32_0 = arith.constant 0 : i32
    %c0_i32_1 = arith.constant 0 : i32
    return %c0_i32, %c0_i32_0 : i32, i32
  }
  func.func @transform_4(%arg0: i32) -> (i32, i32) {
    %c0_i32 = arith.constant 0 : i32
    %c0_i32_0 = arith.constant 0 : i32
    %c0_i32_1 = arith.constant 0 : i32
    return %c0_i32, %c0_i32_0 : i32, i32
  }
  func.func @transform_5(%arg0: i32) -> (i32, i32) {
    %c0_i32 = arith.constant 0 : i32
    %c0_i32_0 = arith.constant 0 : i32
    %c0_i32_1 = arith.constant 0 : i32
    return %c0_i32, %c0_i32_0 : i32, i32
  }
  func.func @transform_6(%arg0: i32) -> (i32, i32) {
    %c0_i32 = arith.constant 0 : i32
    %c0_i32_0 = arith.constant 0 : i32
    return %arg0, %c0_i32 : i32, i32
  }
}

</mosaic_0001>

<llo_original>
// kernel: tpu_custom_call.1
$region0: #{tpu_custom_call.1}
  #allocation0 [shape = 'u32[]', space=smem, size = 0x4, offset = 0x4, fixed_abs, tag = 'smem constant byte address 0x4 - core index']
  #allocation1 [shape = 'u32[72,128]{1,0:T(1,128)}', space=vmem, size = 0x9000, scoped, tag = 'internal scratch']
  #allocation2 [shape = 'f32[16,64]{1,0:T(8,128)}', space=vmem, size = 0x2000, scoped, tag = 'scratch operand']
  %s0 = inlined_call_operand.hbm [shape: f32[32,64], index: 0, kind: input, shape index: {}]
  %s1 = inlined_call_operand.hbm [shape: f32[64,128], index: 1, kind: input, shape index: {}]
  %s2 = inlined_call_operand.hbm [shape: f32[64,64], index: 2, kind: input, shape index: {}]
  %s3 = inlined_call_operand.hbm [shape: f32[16,128], index: 3, kind: input, shape index: {}]
  %s4 = inlined_call_operand.hbm [shape: f32[16,128], index: 4, kind: input, shape index: {}]
  %s5 = inlined_call_operand.hbm [shape: f32[16,128], index: 5, kind: input, shape index: {}]
  %s6 = inlined_call_operand.hbm [shape: f32[32,64], index: 6, kind: output, shape index: {}]
  %s7 = sld [smem:[#allocation0]]
  $region81: #{tpu_custom_call.1} parent=0
    _
  %s9 = ssub.s32 1, %s7
  %s10 = scalar_select 0, %s9, %s7
  $region1: #{tpu_custom_call.1} parent=0
    #allocation3 [shape = 'u8[16384]{0}', space=vmem, size = 0x4000, scoped, tag = 'input window, operand 0']
    #allocation4 [shape = 's32[2]{0}', space=sflag, size = 0x8, scoped, tag = 'scoped memory for tpu_custom_call.1']
    #allocation5 [shape = 's32[2]{0}', space=sflag, size = 0x8, scoped, tag = 'scoped memory for tpu_custom_call.1']
    #allocation6 [shape = 'u8[32768]{0}', space=vmem, size = 0x8000, scoped, tag = 'input window, operand 1, single buffered']
    #allocation7 [shape = 's32[1]{0}', space=sflag, size = 0x4, scoped, tag = 'scoped memory for tpu_custom_call.1']
    #allocation8 [shape = 'u8[32768]{0}', space=vmem, size = 0x8000, scoped, tag = 'input window, operand 2, single buffered']
    #allocation9 [shape = 'u8[8192]{0}', space=vmem, size = 0x2000, scoped, tag = 'input window, operand 3, single buffered']
    #allocation10 [shape = 's32[1]{0}', space=sflag, size = 0x4, scoped, tag = 'scoped memory for tpu_custom_call.1']
    #allocation11 [shape = 'u8[8192]{0}', space=vmem, size = 0x2000, scoped, tag = 'input window, operand 4, single buffered']
    #allocation12 [shape = 'u8[8192]{0}', space=vmem, size = 0x2000, scoped, tag = 'input window, operand 5, single buffered']
    #allocation13 [shape = 's32[1]{0}', space=sflag, size = 0x4, scoped, tag = 'scoped memory for tpu_custom_call.1']
    #allocation14 [shape = 'u8[16384]{0}', space=vmem, size = 0x4000, scoped, tag = 'output window, operand 0']
    %11 = vsyncpa [#allocation4], 0
    %s12 = scalar_lea.sflag [#allocation4], 1
    %13 = vsyncpa %s12, 0
    %14 = vsyncpa [#allocation7], 0
    %15 = vsyncpa [#allocation10], 0
    %16 = vsyncpa [#allocation13], 0
    %17 = vsyncpa [#allocation5], 0
    %s18 = scalar_lea.sflag [#allocation5], 1
    %19 = vsyncpa %s18, 0
    loop: start=0, step=1, limit=4
    $region2: #{tpu_custom_call.1} parent=1 // loop_pre_header
      _
    $region3: #{tpu_custom_call.1} parent=1 // loop_header
      %s21 = sphi 0, %s25
      %p22 = scmp.ge.s32.totalorder %s21, 4
      %s31 = sphi 0, %s33
      %s34 = sphi 0, %s31
      %s35 = sphi 0, %s34
      %s51 = sphi 0, %s35
      %s55 = sphi 0, %s55
      %s57 = sphi 0, %s55
      %s58 = sphi 0, %s57
      %s72 = sphi 0, %s58
      %s76 = sphi 0, %s76
      %s78 = sphi 0, %s76
      %s79 = sphi 0, %s78
      %s93 = sphi 0, %s79
      %s97 = sphi 0, %s97
      %s99 = sphi 0, %s97
      %s100 = sphi 0, %s99
      %s114 = sphi 0, %s100
      %s118 = sphi 0, %s118
      %s120 = sphi 0, %s118
      %s121 = sphi 0, %s120
      %s135 = sphi 0, %s121
      %s139 = sphi 0, %s139
      %s141 = sphi 0, %s139
      %s142 = sphi 0, %s141
      %s156 = sphi 0, %s142
      %s162 = sphi 0, %s164
      %s165 = sphi 0, %s162
      %s166 = sphi 0, %s165
      %s182 = sphi 0, %s166
    $region4: #{tpu_custom_call.1} parent=1 // loop_header_branch
      %24 = sbr.rel (%p22) target = $region8
    $region5: #{tpu_custom_call.1} parent=1 // loop_body
      %s26 = ssub.s32 %s21, 1
      %s27 = ssub.s32 %s21, 2
      %s28 = sadd.s32 %s21, 1
      %s29 = ssub.s32 %s21, %s28
      %p30 = scmp.eq.s32.totalorder %s29, 0
      %s32 = sadd.s32 %s31, 1
      %s33 = scalar_select %p30, %s31, %s32
      %p36 = pneg %p30
      %p37 = scmp.eq.s32.totalorder %s21, 1
      %p38 = por %p36, %p37
      %p39 = scmp.ne.s32.totalorder %s31, %s34
      %p40 = scmp.eq.s32.totalorder %s21, 0
      %p41 = por %p39, %p40
      %p42 = scmp.ne.s32.totalorder %s31, %s34
      %p43 = scmp.eq.s32.totalorder %s26, 1
      %p44 = por %p42, %p43
      %p45 = scmp.ne.s32.totalorder %s34, %s35
      %p46 = scmp.eq.s32.totalorder %s26, 0
      %p47 = por %p45, %p46
      %p48 = scmp.ne.s32.totalorder %s34, %s35
      %p49 = scmp.eq.s32.totalorder %s27, 1
      %p50 = por %p48, %p49
      %p52 = scmp.ne.s32.totalorder %s35, %s51
      %p53 = scmp.eq.s32.totalorder %s27, 0
      %p54 = por %p52, %p53
      %s56 = sadd.s32 %s55, 1
      %p59 = scmp.eq.s32.totalorder %s21, 1
      %p60 = scmp.ne.s32.totalorder %s55, %s57
      %p61 = scmp.eq.s32.totalorder %s21, 0
      %p62 = por %p60, %p61
      %p63 = scmp.ne.s32.totalorder %s55, %s57
      %p64 = scmp.eq.s32.totalorder %s26, 1
      %p65 = por %p63, %p64
      %p66 = scmp.ne.s32.totalorder %s57, %s58
      %p67 = scmp.eq.s32.totalorder %s26, 0
      %p68 = por %p66, %p67
      %p69 = scmp.ne.s32.totalorder %s57, %s58
      %p70 = scmp.eq.s32.totalorder %s27, 1
      %p71 = por %p69, %p70
      %p73 = scmp.ne.s32.totalorder %s58, %s72
      %p74 = scmp.eq.s32.totalorder %s27, 0
      %p75 = por %p73, %p74
      %s77 = sadd.s32 %s76, 1
      %p80 = scmp.eq.s32.totalorder %s21, 1
      %p81 = scmp.ne.s32.totalorder %s76, %s78
      %p82 = scmp.eq.s32.totalorder %s21, 0
      %p83 = por %p81, %p82
      %p84 = scmp.ne.s32.totalorder %s76, %s78
      %p85 = scmp.eq.s32.totalorder %s26, 1
      %p86 = por %p84, %p85
      %p87 = scmp.ne.s32.totalorder %s78, %s79
      %p88 = scmp.eq.s32.totalorder %s26, 0
      %p89 = por %p87, %p88
      %p90 = scmp.ne.s32.totalorder %s78, %s79
      %p91 = scmp.eq.s32.totalorder %s27, 1
      %p92 = por %p90, %p91
      %p94 = scmp.ne.s32.totalorder %s79, %s93
      %p95 = scmp.eq.s32.totalorder %s27, 0
      %p96 = por %p94, %p95
      %s98 = sadd.s32 %s97, 1
      %p101 = scmp.eq.s32.totalorder %s21, 1
      %p102 = scmp.ne.s32.totalorder %s97, %s99
      %p103 = scmp.eq.s32.totalorder %s21, 0
      %p104 = por %p102, %p103
      %p105 = scmp.ne.s32.totalorder %s97, %s99
      %p106 = scmp.eq.s32.totalorder %s26, 1
      %p107 = por %p105, %p106
      %p108 = scmp.ne.s32.totalorder %s99, %s100
      %p109 = scmp.eq.s32.totalorder %s26, 0
      %p110 = por %p108, %p109
      %p111 = scmp.ne.s32.totalorder %s99, %s100
      %p112 = scmp.eq.s32.totalorder %s27, 1
      %p113 = por %p111, %p112
      %p115 = scmp.ne.s32.totalorder %s100, %s114
      %p116 = scmp.eq.s32.totalorder %s27, 0
      %p117 = por %p115, %p116
      %s119 = sadd.s32 %s118, 1
      %p122 = scmp.eq.s32.totalorder %s21, 1
      %p123 = scmp.ne.s32.totalorder %s118, %s120
      %p124 = scmp.eq.s32.totalorder %s21, 0
      %p125 = por %p123, %p124
      %p126 = scmp.ne.s32.totalorder %s118, %s120
      %p127 = scmp.eq.s32.totalorder %s26, 1
      %p128 = por %p126, %p127
      %p129 = scmp.ne.s32.totalorder %s120, %s121
      %p130 = scmp.eq.s32.totalorder %s26, 0
      %p131 = por %p129, %p130
      %p132 = scmp.ne.s32.totalorder %s120, %s121
      %p133 = scmp.eq.s32.totalorder %s27, 1
      %p134 = por %p132, %p133
      %p136 = scmp.ne.s32.totalorder %s121, %s135
      %p137 = scmp.eq.s32.totalorder %s27, 0
      %p138 = por %p136, %p137
      %s140 = sadd.s32 %s139, 1
      %p143 = scmp.eq.s32.totalorder %s21, 1
      %p144 = scmp.ne.s32.totalorder %s139, %s141
      %p145 = scmp.eq.s32.totalorder %s21, 0
      %p146 = por %p144, %p145
      %p147 = scmp.ne.s32.totalorder %s139, %s141
      %p148 = scmp.eq.s32.totalorder %s26, 1
      %p149 = por %p147, %p148
      %p150 = scmp.ne.s32.totalorder %s141, %s142
      %p151 = scmp.eq.s32.totalorder %s26, 0
      %p152 = por %p150, %p151
      %p153 = scmp.ne.s32.totalorder %s141, %s142
      %p154 = scmp.eq.s32.totalorder %s27, 1
      %p155 = por %p153, %p154
      %p157 = scmp.ne.s32.totalorder %s142, %s156
      %p158 = scmp.eq.s32.totalorder %s27, 0
      %p159 = por %p157, %p158
      %s160 = ssub.s32 %s21, %s28
      %p161 = scmp.eq.s32.totalorder %s160, 0
      %s163 = sadd.s32 %s162, 1
      %s164 = scalar_select %p161, %s162, %s163
      %p167 = pneg %p161
      %p168 = scmp.eq.s32.totalorder %s21, 1
      %p169 = por %p167, %p168
      %p170 = scmp.ne.s32.totalorder %s162, %s165
      %p171 = scmp.eq.s32.totalorder %s21, 0
      %p172 = por %p170, %p171
      %p173 = scmp.ne.s32.totalorder %s162, %s165
      %p174 = scmp.eq.s32.totalorder %s26, 1
      %p175 = por %p173, %p174
      %p176 = scmp.ne.s32.totalorder %s165, %s166
      %p177 = scmp.eq.s32.totalorder %s26, 0
      %p178 = por %p176, %p177
      %p179 = scmp.ne.s32.totalorder %s165, %s166
      %p180 = scmp.eq.s32.totalorder %s27, 1
      %p181 = por %p179, %p180
      %p183 = scmp.ne.s32.totalorder %s166, %s182
      %p184 = scmp.eq.s32.totalorder %s27, 0
      %p185 = por %p183, %p184
      %p186 = scmp.le.s32.totalorder 1, %s21
      %p187 = scmp.lt.s32.totalorder %s21, 3
      %p188 = pnand %p186, %p187
      %p189 = pneg %p188
      // Predicated region
      $region9: #{tpu_custom_call.1} parent=5 // pred_check
        _
      $region10: #{tpu_custom_call.1} parent=5 // pred_check_branch
        %191 = sbr.rel (%p188) target = $region12
      $region11: #{tpu_custom_call.1} parent=5 // pred_region
        %s192 = ssub.s32 %s21, 1
        // Predicated region
        $region13: #{tpu_custom_call.1} parent=11 // pred_check
          %p193 = pneg %p68
        $region14: #{tpu_custom_call.1} parent=11 // pred_check_branch
          %195 = sbr.rel (%p193) target = $region16
        $region15: #{tpu_custom_call.1} parent=11 // pred_region
          %197 = vsyncadd [#allocation7], 0
          %s198 = sshll.u32 %s1, 4
          %s199 = int_to_ptr.hbm [resolvable:$true] %s198
          %s200 = sshll.u32 [#allocation6], 4
          %s201 = int_to_ptr.vmem [resolvable:$true] %s200
          %206 = dma.hbm_to_vmem [thread:$0]  %s199, 1024, %s201, [#allocation7], 128, 128, 8
        $region16: #{tpu_custom_call.1} parent=11 // pred_fallthru
          _
        // Predicated region
        $region17: #{tpu_custom_call.1} parent=11 // pred_check
          %p207 = pneg %p89
        $region18: #{tpu_custom_call.1} parent=11 // pred_check_branch
          %209 = sbr.rel (%p207) target = $region20
        $region19: #{tpu_custom_call.1} parent=11 // pred_region
          %211 = vsyncadd [#allocation7], 0
          %s212 = sshll.u32 %s2, 4
          %s213 = int_to_ptr.hbm [resolvable:$true] %s212
          %s214 = sshll.u32 [#allocation8], 4
          %s215 = int_to_ptr.vmem [resolvable:$true] %s214
          %220 = dma.hbm_to_vmem [thread:$0]  %s213, 1024, %s215, [#allocation7], 128, 128, 8
        $region20: #{tpu_custom_call.1} parent=11 // pred_fallthru
          _
        // Predicated region
        $region21: #{tpu_custom_call.1} parent=11 // pred_check
          %p221 = pneg %p110
        $region22: #{tpu_custom_call.1} parent=11 // pred_check_branch
          %223 = sbr.rel (%p221) target = $region24
        $region23: #{tpu_custom_call.1} parent=11 // pred_region
          %225 = vsyncadd [#allocation10], 0
          %s226 = sshll.u32 %s3, 4
          %s227 = int_to_ptr.hbm [resolvable:$true] %s226
          %s228 = sshll.u32 [#allocation9], 4
          %s229 = int_to_ptr.vmem [resolvable:$true] %s228
          %234 = dma.hbm_to_vmem [thread:$0]  %s227, 256, %s229, [#allocation10], 128, 128, 8
        $region24: #{tpu_custom_call.1} parent=11 // pred_fallthru
          _
        // Predicated region
        $region25: #{tpu_custom_call.1} parent=11 // pred_check
          %p235 = pneg %p131
        $region26: #{tpu_custom_call.1} parent=11 // pred_check_branch
          %237 = sbr.rel (%p235) target = $region28
        $region27: #{tpu_custom_call.1} parent=11 // pred_region
          %239 = vsyncadd [#allocation10], 0
          %s240 = sshll.u32 %s4, 4
          %s241 = int_to_ptr.hbm [resolvable:$true] %s240
          %s242 = sshll.u32 [#allocation11], 4
          %s243 = int_to_ptr.vmem [resolvable:$true] %s242
          %248 = dma.hbm_to_vmem [thread:$0]  %s241, 256, %s243, [#allocation10], 128, 128, 8
        $region28: #{tpu_custom_call.1} parent=11 // pred_fallthru
          _
        // Predicated region
        $region29: #{tpu_custom_call.1} parent=11 // pred_check
          %p249 = pneg %p152
        $region30: #{tpu_custom_call.1} parent=11 // pred_check_branch
          %251 = sbr.rel (%p249) target = $region32
        $region31: #{tpu_custom_call.1} parent=11 // pred_region
          %253 = vsyncadd [#allocation13], 0
          %s254 = sshll.u32 %s5, 4
          %s255 = int_to_ptr.hbm [resolvable:$true] %s254
          %s256 = sshll.u32 [#allocation12], 4
          %s257 = int_to_ptr.vmem [resolvable:$true] %s256
          %262 = dma.hbm_to_vmem [thread:$0]  %s255, 256, %s257, [#allocation13], 128, 128, 8
        $region32: #{tpu_custom_call.1} parent=11 // pred_fallthru
          _
      $region12: #{tpu_custom_call.1} parent=5 // pred_fallthru
        _
      %p263 = scmp.lt.s32.totalorder %s21, 2
      // Predicated region
      $region33: #{tpu_custom_call.1} parent=5 // pred_check
        %p264 = pneg %p263
      $region34: #{tpu_custom_call.1} parent=5 // pred_check_branch
        %266 = sbr.rel (%p264) target = $region36
      $region35: #{tpu_custom_call.1} parent=5 // pred_region
        // Predicated region
        $region37: #{tpu_custom_call.1} parent=35 // pred_check
          %p267 = pneg %p41
        $region38: #{tpu_custom_call.1} parent=35 // pred_check_branch
          %269 = sbr.rel (%p267) target = $region40
        $region39: #{tpu_custom_call.1} parent=35 // pred_region
          %s270 = sand.u32 %s31, 1
          %s271 = scalar_lea.sflag [#allocation4], %s270
          %s272 = sand.u32 %s31, 1
          %s273 = smul.addr %s272, 16
          %s274 = scalar_lea.vmem [#allocation3], %s273
          %s275 = smul.u32 2, %s21
          %277 = vsyncadd %s271, 0
          %s278 = smul.addr %s275, 8
          %s279 = scalar_lea.hbm %s0, %s278
          %s280 = sshll.u32 %s279, 4
          %s281 = int_to_ptr.hbm [resolvable:$true] %s280
          %s282 = sshll.u32 %s274, 4
          %s283 = int_to_ptr.vmem [resolvable:$true] %s282
          %288 = dma.hbm_to_vmem [thread:$0]  %s281, 256, %s283, %s271, 128, 128, 8
        $region40: #{tpu_custom_call.1} parent=35 // pred_fallthru
          _
      $region36: #{tpu_custom_call.1} parent=5 // pred_fallthru
        _
      %p289 = scmp.le.s32.totalorder 1, %s21
      %p290 = scmp.lt.s32.totalorder %s21, 3
      %p291 = pnand %p289, %p290
      %p292 = pneg %p291
      // Predicated region
      $region41: #{tpu_custom_call.1} parent=5 // pred_check
        _
      $region42: #{tpu_custom_call.1} parent=5 // pred_check_branch
        %294 = sbr.rel (%p291) target = $region44
      $region43: #{tpu_custom_call.1} parent=5 // pred_region
        %s295 = ssub.s32 %s21, 1
        %s296 = sand.u32 %s34, 1
        %s297 = scalar_lea.sflag [#allocation4], %s296
        %s298 = sand.u32 %s34, 1
        %s299 = smul.addr %s298, 16
        %s300 = scalar_lea.vmem [#allocation3], %s299
        // Predicated region
        $region45: #{tpu_custom_call.1} parent=43 // pred_check
          %p301 = pneg %p47
        $region46: #{tpu_custom_call.1} parent=43 // pred_check_branch
          %303 = sbr.rel (%p301) target = $region48
        $region47: #{tpu_custom_call.1} parent=43 // pred_region
          %305 = dma.done %s297, 256
        $region48: #{tpu_custom_call.1} parent=43 // pred_fallthru
          _
        // Predicated region
        $region49: #{tpu_custom_call.1} parent=43 // pred_check
          %p306 = pneg %p68
        $region50: #{tpu_custom_call.1} parent=43 // pred_check_branch
          %308 = sbr.rel (%p306) target = $region52
        $region51: #{tpu_custom_call.1} parent=43 // pred_region
          %310 = dma.done [#allocation7], 1024
        $region52: #{tpu_custom_call.1} parent=43 // pred_fallthru
          _
        // Predicated region
        $region53: #{tpu_custom_call.1} parent=43 // pred_check
          %p311 = pneg %p89
        $region54: #{tpu_custom_call.1} parent=43 // pred_check_branch
          %313 = sbr.rel (%p311) target = $region56
        $region55: #{tpu_custom_call.1} parent=43 // pred_region
          %315 = dma.done [#allocation7], 1024
        $region56: #{tpu_custom_call.1} parent=43 // pred_fallthru
          _
        // Predicated region
        $region57: #{tpu_custom_call.1} parent=43 // pred_check
          %p316 = pneg %p110
        $region58: #{tpu_custom_call.1} parent=43 // pred_check_branch
          %318 = sbr.rel (%p316) target = $region60
        $region59: #{tpu_custom_call.1} parent=43 // pred_region
          %320 = dma.done [#allocation10], 256
        $region60: #{tpu_custom_call.1} parent=43 // pred_fallthru
          _
        // Predicated region
        $region61: #{tpu_custom_call.1} parent=43 // pred_check
          %p321 = pneg %p131
        $region62: #{tpu_custom_call.1} parent=43 // pred_check_branch
          %323 = sbr.rel (%p321) target = $region64
        $region63: #{tpu_custom_call.1} parent=43 // pred_region
          %325 = dma.done [#allocation10], 256
        $region64: #{tpu_custom_call.1} parent=43 // pred_fallthru
          _
        // Predicated region
        $region65: #{tpu_custom_call.1} parent=43 // pred_check
          %p326 = pneg %p152
        $region66: #{tpu_custom_call.1} parent=43 // pred_check_branch
          %328 = sbr.rel (%p326) target = $region68
        $region67: #{tpu_custom_call.1} parent=43 // pred_region
          %330 = dma.done [#allocation13], 256
        $region68: #{tpu_custom_call.1} parent=43 // pred_fallthru
          _
        %s331 = sand.u32 %s34, 1
        %s332 = scalar_lea.sflag [#allocation4], %s331
        %s333 = sand.u32 %s34, 1
        %s334 = smul.addr %s333, 16
        %s335 = scalar_lea.vmem [#allocation3], %s334
        %p336 = pneg %p47
        %p337 = pneg %p44
        %p338 = pneg %p68
        %p339 = pneg %p65
        %p340 = pneg %p89
        %p341 = pneg %p86
        %p342 = pneg %p110
        %p343 = pneg %p107
        %p344 = pneg %p131
        %p345 = pneg %p128
        %p346 = pneg %p152
        %p347 = pneg %p149
        %p348 = pneg %p178
        %p349 = pneg %p175
        %s350 = sand.u32 %s165, 1
        %s351 = scalar_lea.sflag [#allocation5], %s350
        %s352 = sand.u32 %s165, 1
        %s353 = smul.addr %s352, 16
        %s354 = scalar_lea.vmem [#allocation14], %s353
        %s355 = smul.u32 2, %s26
        %s356 = smul.u32 2, %s26
        %v357 = vld [vmem:[%s300] sm:$0xff]
        %v358 = vld [vmem:[%s300 + $0x8] sm:$0xff]
        %v359 = vld [vmem:[#allocation6] sm:$0xff]
        %v360 = vld [vmem:[#allocation6 + $0x8] sm:$0xff]
        %v361 = vld [vmem:[#allocation6 + $0x10] sm:$0xff]
        %v362 = vld [vmem:[#allocation6 + $0x18] sm:$0xff]
        %v363 = vld [vmem:[#allocation6 + $0x20] sm:$0xff]
        %v364 = vld [vmem:[#allocation6 + $0x28] sm:$0xff]
        %v365 = vld [vmem:[#allocation6 + $0x30] sm:$0xff]
        %v366 = vld [vmem:[#allocation6 + $0x38] sm:$0xff]
        %vm367 = vcmask 523264
        %v369 = vsel %vm367, %v357, 0
        %v372 = vsel %vm367, %v358, 0
        %374 = vmatpush.msra.mxu0 0.0
        %375 = vmatpush.msra.mxu0 0.0
        %376 = vmatpush.msra.mxu0 0.0
        %377 = vmatpush.msra.mxu0 0.0
        %378 = vmatpush.msra.mxu0 0.0
        %379 = vmatpush.msra.mxu0 0.0
        %380 = vmatpush.msra.mxu0 0.0
        %381 = vmatpush.msra.mxu0 0.0
        %382 = vmatpush.msra.mxu0 %v366
        %383 = vmatpush.msra.mxu0 %v365
        %384 = vmatpush.msra.mxu0 %v364
        %385 = vmatpush.msra.mxu0 %v363
        %386 = vmatpush.msra.mxu0 %v362
        %387 = vmatpush.msra.mxu0 %v361
        %388 = vmatpush.msra.mxu0 %v360
        %389 = vmatpush.msra.mxu0 %v359
        %390 = vmatmul.f32.gmra.mxu0 %v369
        %v391 = vpop.f32.mrf.mxu0
        %v392 = vadd.f32 0.0, %v391
        %393 = vmatmul.f32.gmra.mxu0 %v372
        %v394 = vpop.f32.mrf.mxu0
        %v395 = vadd.f32 0.0, %v394
        %396 = vdwg.mxu0
        %v397 = vld [vmem:[#allocation9] sm:$0xff]
        %v398 = vld [vmem:[#allocation9 + $0x8] sm:$0xff]
        %v399 = vmul.f32 %v392, %v397
        %v400 = vmul.f32 %v395, %v398
        %403 = vrot.lane.b32.xlu0 %v392, 127
        %v404 = vpop.permute.xlu0 %403
        %405 = vrot.lane.b32.xlu0 %v395, 127
        %v406 = vpop.permute.xlu0 %405
        %v409 = vld [vmem:[#allocation11] sm:$0xff]
        %v410 = vld [vmem:[#allocation11 + $0x8] sm:$0xff]
        %v411 = vmul.f32 %v404, %v409
        %v412 = vmul.f32 %v406, %v410
        %v413 = vadd.f32 %v399, %v411
        %v414 = vadd.f32 %v400, %v412
        %415 = vrot.lane.b32.xlu0 %v392, 1
        %v416 = vpop.permute.xlu0 %415
        %417 = vrot.lane.b32.xlu0 %v395, 1
        %v418 = vpop.permute.xlu0 %417
        %v421 = vld [vmem:[#allocation12] sm:$0xff]
        %v422 = vld [vmem:[#allocation12 + $0x8] sm:$0xff]
        %v423 = vmul.f32 %v416, %v421
        %v424 = vmul.f32 %v418, %v422
        %v425 = vadd.f32 %v413, %v423
        %v426 = vadd.f32 %v414, %v424
        %v427 = vlaneseq
        %v428 = vshrl.u32 %v427, 7
        %v429 = vadd.s32 %v428, 8
        %v430 = vadd.s32 %v428, 16
        %v431 = vadd.s32 %v428, 24
        %vm432 = vcmp.lt.s32.totalorder %v428, 0
        %v433 = vsub.s32 0, %v428
        %v434 = vsel %vm432, %v433, %v428
        %v435 = vshrl.u32 %v434, 4
        %v436 = vand.u32 %v434, 15
        %v437 = vsub.s32 0, %v436
        %v438 = vsel %vm432, %v437, %v436
        %vm439 = vcmp.lt.s32.totalorder %v429, 0
        %v440 = vsub.s32 0, %v429
        %v441 = vsel %vm439, %v440, %v429
        %v442 = vshrl.u32 %v441, 4
        %v443 = vand.u32 %v441, 15
        %v444 = vsub.s32 0, %v443
        %v445 = vsel %vm439, %v444, %v443
        %vm446 = vcmp.lt.s32.totalorder %v430, 0
        %v447 = vsub.s32 0, %v430
        %v448 = vsel %vm446, %v447, %v430
        %v449 = vshrl.u32 %v448, 4
        %v450 = vand.u32 %v448, 15
        %v451 = vsub.s32 0, %v450
        %v452 = vsel %vm446, %v451, %v450
        %vm453 = vcmp.lt.s32.totalorder %v431, 0
        %v454 = vsub.s32 0, %v431
        %v455 = vsel %vm453, %v454, %v431
        %v456 = vshrl.u32 %v455, 4
        %v457 = vand.u32 %v455, 15
        %v458 = vsub.s32 0, %v457
        %v459 = vsel %vm453, %v458, %v457
        %v460 = vlaneseq
        %v461 = vand.u32 %v460, 127
        %vm462 = vcmp.le.s32.totalorder %v461, %v438
        %vm463 = vcmp.le.s32.totalorder %v461, %v445
        %vm464 = vcmp.le.s32.totalorder %v461, %v452
        %vm465 = vcmp.le.s32.totalorder %v461, %v459
        %468 = vrot.lane.b32.xlu0 %v425, 112
        %v469 = vpop.permute.xlu0 %468
        %470 = vrot.lane.b32.xlu0 %v426, 112
        %v471 = vpop.permute.xlu0 %470
        %472 = vrot.lane.b32.xlu0 %v425, 64
        %v473 = vpop.permute.xlu0 %472
        %474 = vrot.lane.b32.xlu0 %v426, 64
        %v475 = vpop.permute.xlu0 %474
        %vm476 = vcmask 130048
        %v477 = vsel %vm476, %v425, 0
        %v479 = vsel %vm476, %v426, 0
        %v481 = vsel %vm476, %v469, 0
        %v483 = vsel %vm476, %v471, 0
        %v485 = vsel %vm476, %v473, 0
        %v487 = vsel %vm476, %v475, 0
        %489 = vmatpush.xpose.msra.mxu0 0.0
        %490 = vmatpush.xpose.msra.mxu0 0.0
        %491 = vmatpush.xpose.msra.mxu0 0.0
        %492 = vmatpush.xpose.msra.mxu0 0.0
        %493 = vmatpush.xpose.msra.mxu0 0.0
        %494 = vmatpush.xpose.msra.mxu0 0.0
        %495 = vmatpush.xpose.msra.mxu0 0.0
        %496 = vmatpush.xpose.msra.mxu0 0.0
        %497 = vmatpush.xpose.msra.mxu0 0.0
        %498 = vmatpush.xpose.msra.mxu0 0.0
        %499 = vmatpush.xpose.msra.mxu0 0.0
        %500 = vmatpush.xpose.msra.mxu0 0.0
        %501 = vmatpush.xpose.msra.mxu0 0.0
        %502 = vmatpush.xpose.msra.mxu0 0.0
        %503 = vmatpush.xpose.msra.mxu0 %v487
        %504 = vmatpush.xpose.msra.mxu0 %v485
        %505 = vmatmul.f32.gmra.mxu0 %v477
        %v506 = vpop.f32.mrf.mxu0
        %v507 = vadd.f32 0.0, %v506
        %508 = vmatmul.f32.gmra.mxu0 %v479
        %v509 = vpop.f32.mrf.mxu0
        %v510 = vadd.f32 0.0, %v509
        %511 = vmatmul.f32.gmra.mxu0 %v481
        %v512 = vpop.f32.mrf.mxu0
        %v513 = vadd.f32 0.0, %v512
        %514 = vmatmul.f32.gmra.mxu0 %v483
        %v515 = vpop.f32.mrf.mxu0
        %v516 = vadd.f32 0.0, %v515
        %517 = vdwg.mxu0
        %v518 = vsel %vm462, %v507, -1e+30
        %v519 = vsel %vm463, %v510, -1e+30
        %v520 = vsel %vm464, %v513, -1e+30
        %v521 = vsel %vm465, %v516, -1e+30
        %v522 = vsel %vm476, %v518, -inf
        %523 = vmax.xlane.f32.xlu0 %v522
        %v524 = vpop.xlane.xlu0 %523
        %v525 = vsel %vm476, %v519, -inf
        %526 = vmax.xlane.f32.xlu0 %v525
        %v527 = vpop.xlane.xlu0 %526
        %v528 = vsel %vm476, %v520, -inf
        %529 = vmax.xlane.f32.xlu0 %v528
        %v530 = vpop.xlane.xlu0 %529
        %v531 = vsel %vm476, %v521, -inf
        %532 = vmax.xlane.f32.xlu0 %v531
        %v533 = vpop.xlane.xlu0 %532
        %v534 = vsub.f32 %v518, %v524
        %v535 = vsub.f32 %v519, %v527
        %v536 = vsub.f32 %v520, %v530
        %v537 = vsub.f32 %v521, %v533
        %v538 = vmul.f32 %v534, 1.442695
        %v539 = vpow.pop %v538
        %v540 = vmul.f32 %v535, 1.442695
        %v541 = vpow.pop %v540
        %v542 = vmul.f32 %v536, 1.442695
        %v543 = vpow.pop %v542
        %v544 = vmul.f32 %v537, 1.442695
        %v545 = vpow.pop %v544
        %v546 = vsel %vm476, %v539, 0.0
        %547 = vadd.xlane.f32.xlu0 %v546
        %v548 = vpop.xlane.xlu0 %547
        %v549 = vsel %vm476, %v541, 0.0
        %550 = vadd.xlane.f32.xlu0 %v549
        %v551 = vpop.xlane.xlu0 %550
        %v552 = vsel %vm476, %v543, 0.0
        %553 = vadd.xlane.f32.xlu0 %v552
        %v554 = vpop.xlane.xlu0 %553
        %v555 = vsel %vm476, %v545, 0.0
        %556 = vadd.xlane.f32.xlu0 %v555
        %v557 = vpop.xlane.xlu0 %556
        %v558 = vrcp.pop %v548
        %v559 = vrcp.pop %v551
        %v560 = vrcp.pop %v554
        %v561 = vrcp.pop %v557
        %v562 = vmul.f32 %v548, %v558
        %v563 = vmul.f32 %v551, %v559
        %v564 = vmul.f32 %v554, %v560
        %v565 = vmul.f32 %v557, %v561
        %v566 = vsub.f32 2.0, %v562
        %v567 = vsub.f32 2.0, %v563
        %v568 = vsub.f32 2.0, %v564
        %v569 = vsub.f32 2.0, %v565
        %v570 = vmul.f32 %v558, %v566
        %v571 = vmul.f32 %v559, %v567
        %v572 = vmul.f32 %v560, %v568
        %v573 = vmul.f32 %v561, %v569
        %574 = vrot.lane.b32.xlu0 %v425, 32
        %v575 = vpop.permute.xlu0 %574
        %576 = vrot.lane.b32.xlu0 %v426, 32
        %v577 = vpop.permute.xlu0 %576
        %v581 = vsel %vm476, %v539, 0
        %v584 = vsel %vm476, %v541, 0
        %v587 = vsel %vm476, %v543, 0
        %v590 = vsel %vm476, %v545, 0
        %592 = vmatpush.msra.mxu0 0.0
        %593 = vmatpush.msra.mxu0 0.0
        %594 = vmatpush.msra.mxu0 0.0
        %595 = vmatpush.msra.mxu0 0.0
        %596 = vmatpush.msra.mxu0 0.0
        %597 = vmatpush.msra.mxu0 0.0
        %598 = vmatpush.msra.mxu0 0.0
        %599 = vmatpush.msra.mxu0 0.0
        %600 = vmatpush.msra.mxu0 0.0
        %601 = vmatpush.msra.mxu0 0.0
        %602 = vmatpush.msra.mxu0 0.0
        %603 = vmatpush.msra.mxu0 0.0
        %604 = vmatpush.msra.mxu0 0.0
        %605 = vmatpush.msra.mxu0 0.0
        %606 = vmatpush.msra.mxu0 %v577
        %607 = vmatpush.msra.mxu0 %v575
        %608 = vmatmul.f32.gmra.mxu0 %v581
        %v609 = vpop.f32.mrf.mxu0
        %v610 = vadd.f32 0.0, %v609
        %611 = vmatmul.f32.gmra.mxu0 %v584
        %v612 = vpop.f32.mrf.mxu0
        %v613 = vadd.f32 0.0, %v612
        %614 = vmatmul.f32.gmra.mxu0 %v587
        %v615 = vpop.f32.mrf.mxu0
        %v616 = vadd.f32 0.0, %v615
        %617 = vmatmul.f32.gmra.mxu0 %v590
        %v618 = vpop.f32.mrf.mxu0
        %v619 = vadd.f32 0.0, %v618
        %620 = vdwg.mxu0
        %v621 = vmul.f32 %v610, %v570
        %v622 = vmul.f32 %v613, %v571
        %v623 = vmul.f32 %v616, %v572
        %v624 = vmul.f32 %v619, %v573
        %625 = vst.msk [vmem:[#allocation2] sm:$0xff] %vm476, %v621
        %626 = vst.msk [vmem:[#allocation2 + $0x8] sm:$0xff] %vm476, %v622
        %629 = vrot.lane.b32.xlu0 %v623, 16
        %v630 = vpop.permute.xlu0 %629
        %631 = vrot.lane.b32.xlu0 %v624, 16
        %v632 = vpop.permute.xlu0 %631
        %vm635 = vcmask 261248
        %636 = vst.msk [vmem:[#allocation2] sm:$0xff] %vm635, %v630
        %637 = vst.msk [vmem:[#allocation2 + $0x8] sm:$0xff] %vm635, %v632
        %638 = vrot.lane.b32.xlu0 %v425, 96
        %v639 = vpop.permute.xlu0 %638
        %640 = vrot.lane.b32.xlu0 %v426, 96
        %v641 = vpop.permute.xlu0 %640
        %642 = vrot.lane.b32.xlu0 %v469, 96
        %v643 = vpop.permute.xlu0 %642
        %644 = vrot.lane.b32.xlu0 %v471, 96
        %v645 = vpop.permute.xlu0 %644
        %646 = vrot.lane.b32.xlu0 %v425, 48
        %v647 = vpop.permute.xlu0 %646
        %648 = vrot.lane.b32.xlu0 %v426, 48
        %v649 = vpop.permute.xlu0 %648
        %v650 = vsel %vm476, %v639, 0
        %v652 = vsel %vm476, %v641, 0
        %v654 = vsel %vm476, %v643, 0
        %v656 = vsel %vm476, %v645, 0
        %v658 = vsel %vm476, %v647, 0
        %v660 = vsel %vm476, %v649, 0
        %662 = vmatpush.xpose.msra.mxu0 0.0
        %663 = vmatpush.xpose.msra.mxu0 0.0
        %664 = vmatpush.xpose.msra.mxu0 0.0
        %665 = vmatpush.xpose.msra.mxu0 0.0
        %666 = vmatpush.xpose.msra.mxu0 0.0
        %667 = vmatpush.xpose.msra.mxu0 0.0
        %668 = vmatpush.xpose.msra.mxu0 0.0
        %669 = vmatpush.xpose.msra.mxu0 0.0
        %670 = vmatpush.xpose.msra.mxu0 0.0
        %671 = vmatpush.xpose.msra.mxu0 0.0
        %672 = vmatpush.xpose.msra.mxu0 0.0
        %673 = vmatpush.xpose.msra.mxu0 0.0
        %674 = vmatpush.xpose.msra.mxu0 0.0
        %675 = vmatpush.xpose.msra.mxu0 0.0
        %676 = vmatpush.xpose.msra.mxu0 %v660
        %677 = vmatpush.xpose.msra.mxu0 %v658
        %678 = vmatmul.f32.gmra.mxu0 %v650
        %v679 = vpop.f32.mrf.mxu0
        %v680 = vadd.f32 0.0, %v679
        %681 = vmatmul.f32.gmra.mxu0 %v652
        %v682 = vpop.f32.mrf.mxu0
        %v683 = vadd.f32 0.0, %v682
        %684 = vmatmul.f32.gmra.mxu0 %v654
        %v685 = vpop.f32.mrf.mxu0
        %v686 = vadd.f32 0.0, %v685
        %687 = vmatmul.f32.gmra.mxu0 %v656
        %v688 = vpop.f32.mrf.mxu0
        %v689 = vadd.f32 0.0, %v688
        %690 = vdwg.mxu0
        %v691 = vsel %vm462, %v680, -1e+30
        %v692 = vsel %vm463, %v683, -1e+30
        %v693 = vsel %vm464, %v686, -1e+30
        %v694 = vsel %vm465, %v689, -1e+30
        %v695 = vsel %vm476, %v691, -inf
        %696 = vmax.xlane.f32.xlu0 %v695
        %v697 = vpop.xlane.xlu0 %696
        %v698 = vsel %vm476, %v692, -inf
        %699 = vmax.xlane.f32.xlu0 %v698
        %v700 = vpop.xlane.xlu0 %699
        %v701 = vsel %vm476, %v693, -inf
        %702 = vmax.xlane.f32.xlu0 %v701
        %v703 = vpop.xlane.xlu0 %702
        %v704 = vsel %vm476, %v694, -inf
        %705 = vmax.xlane.f32.xlu0 %v704
        %v706 = vpop.xlane.xlu0 %705
        %v707 = vsub.f32 %v691, %v697
        %v708 = vsub.f32 %v692, %v700
        %v709 = vsub.f32 %v693, %v703
        %v710 = vsub.f32 %v694, %v706
        %v711 = vmul.f32 %v707, 1.442695
        %v712 = vpow.pop %v711
        %v713 = vmul.f32 %v708, 1.442695
        %v714 = vpow.pop %v713
        %v715 = vmul.f32 %v709, 1.442695
        %v716 = vpow.pop %v715
        %v717 = vmul.f32 %v710, 1.442695
        %v718 = vpow.pop %v717
        %v719 = vsel %vm476, %v712, 0.0
        %720 = vadd.xlane.f32.xlu0 %v719
        %v721 = vpop.xlane.xlu0 %720
        %v722 = vsel %vm476, %v714, 0.0
        %723 = vadd.xlane.f32.xlu0 %v722
        %v724 = vpop.xlane.xlu0 %723
        %v725 = vsel %vm476, %v716, 0.0
        %726 = vadd.xlane.f32.xlu0 %v725
        %v727 = vpop.xlane.xlu0 %726
        %v728 = vsel %vm476, %v718, 0.0
        %729 = vadd.xlane.f32.xlu0 %v728
        %v730 = vpop.xlane.xlu0 %729
        %v731 = vrcp.pop %v721
        %v732 = vrcp.pop %v724
        %v733 = vrcp.pop %v727
        %v734 = vrcp.pop %v730
        %v735 = vmul.f32 %v721, %v731
        %v736 = vmul.f32 %v724, %v732
        %v737 = vmul.f32 %v727, %v733
        %v738 = vmul.f32 %v730, %v734
        %v739 = vsub.f32 2.0, %v735
        %v740 = vsub.f32 2.0, %v736
        %v741 = vsub.f32 2.0, %v737
        %v742 = vsub.f32 2.0, %v738
        %v743 = vmul.f32 %v731, %v739
        %v744 = vmul.f32 %v732, %v740
        %v745 = vmul.f32 %v733, %v741
        %v746 = vmul.f32 %v734, %v742
        %747 = vrot.lane.b32.xlu0 %v425, 16
        %v748 = vpop.permute.xlu0 %747
        %749 = vrot.lane.b32.xlu0 %v426, 16
        %v750 = vpop.permute.xlu0 %749
        %v754 = vsel %vm476, %v712, 0
        %v757 = vsel %vm476, %v714, 0
        %v760 = vsel %vm476, %v716, 0
        %v763 = vsel %vm476, %v718, 0
        %765 = vmatpush.msra.mxu0 0.0
        %766 = vmatpush.msra.mxu0 0.0
        %767 = vmatpush.msra.mxu0 0.0
        %768 = vmatpush.msra.mxu0 0.0
        %769 = vmatpush.msra.mxu0 0.0
        %770 = vmatpush.msra.mxu0 0.0
        %771 = vmatpush.msra.mxu0 0.0
        %772 = vmatpush.msra.mxu0 0.0
        %773 = vmatpush.msra.mxu0 0.0
        %774 = vmatpush.msra.mxu0 0.0
        %775 = vmatpush.msra.mxu0 0.0
        %776 = vmatpush.msra.mxu0 0.0
        %777 = vmatpush.msra.mxu0 0.0
        %778 = vmatpush.msra.mxu0 0.0
        %779 = vmatpush.msra.mxu0 %v750
        %780 = vmatpush.msra.mxu0 %v748
        %781 = vmatmul.f32.gmra.mxu0 %v754
        %v782 = vpop.f32.mrf.mxu0
        %v783 = vadd.f32 0.0, %v782
        %784 = vmatmul.f32.gmra.mxu0 %v757
        %v785 = vpop.f32.mrf.mxu0
        %v786 = vadd.f32 0.0, %v785
        %787 = vmatmul.f32.gmra.mxu0 %v760
        %v788 = vpop.f32.mrf.mxu0
        %v789 = vadd.f32 0.0, %v788
        %790 = vmatmul.f32.gmra.mxu0 %v763
        %v791 = vpop.f32.mrf.mxu0
        %v792 = vadd.f32 0.0, %v791
        %793 = vdwg.mxu0
        %v794 = vmul.f32 %v783, %v743
        %v795 = vmul.f32 %v786, %v744
        %v796 = vmul.f32 %v789, %v745
        %v797 = vmul.f32 %v792, %v746
        %800 = vrot.lane.b32.xlu0 %v794, 32
        %v801 = vpop.permute.xlu0 %800
        %802 = vrot.lane.b32.xlu0 %v795, 32
        %v803 = vpop.permute.xlu0 %802
        %vm806 = vcmask 392448
        %807 = vst.msk [vmem:[#allocation2] sm:$0xff] %vm806, %v801
        %808 = vst.msk [vmem:[#allocation2 + $0x8] sm:$0xff] %vm806, %v803
        %811 = vrot.lane.b32.xlu0 %v796, 48
        %v812 = vpop.permute.xlu0 %811
        %813 = vrot.lane.b32.xlu0 %v797, 48
        %v814 = vpop.permute.xlu0 %813
        %vm817 = vcmask 523648
        %818 = vst.msk [vmem:[#allocation2] sm:$0xff] %vm817, %v812
        %819 = vst.msk [vmem:[#allocation2 + $0x8] sm:$0xff] %vm817, %v814
        %v820 = vld [vmem:[#allocation2] sm:$0xff]
        %v821 = vld [vmem:[#allocation2 + $0x8] sm:$0xff]
        %v822 = vld [vmem:[#allocation8] sm:$0xff]
        %v823 = vld [vmem:[#allocation8 + $0x8] sm:$0xff]
        %v824 = vld [vmem:[#allocation8 + $0x10] sm:$0xff]
        %v825 = vld [vmem:[#allocation8 + $0x18] sm:$0xff]
        %v826 = vld [vmem:[#allocation8 + $0x20] sm:$0xff]
        %v827 = vld [vmem:[#allocation8 + $0x28] sm:$0xff]
        %v828 = vld [vmem:[#allocation8 + $0x30] sm:$0xff]
        %v829 = vld [vmem:[#allocation8 + $0x38] sm:$0xff]
        %v831 = vsel %vm367, %v820, 0
        %v834 = vsel %vm367, %v821, 0
        %836 = vmatpush.msra.mxu0 0.0
        %837 = vmatpush.msra.mxu0 0.0
        %838 = vmatpush.msra.mxu0 0.0
        %839 = vmatpush.msra.mxu0 0.0
        %840 = vmatpush.msra.mxu0 0.0
        %841 = vmatpush.msra.mxu0 0.0
        %842 = vmatpush.msra.mxu0 0.0
        %843 = vmatpush.msra.mxu0 0.0
        %844 = vmatpush.msra.mxu0 %v829
        %845 = vmatpush.msra.mxu0 %v828
        %846 = vmatpush.msra.mxu0 %v827
        %847 = vmatpush.msra.mxu0 %v826
        %848 = vmatpush.msra.mxu0 %v825
        %849 = vmatpush.msra.mxu0 %v824
        %850 = vmatpush.msra.mxu0 %v823
        %851 = vmatpush.msra.mxu0 %v822
        %852 = vmatmul.f32.gmra.mxu0 %v831
        %v853 = vpop.f32.mrf.mxu0
        %v854 = vadd.f32 0.0, %v853
        %855 = vmatmul.f32.gmra.mxu0 %v834
        %v856 = vpop.f32.mrf.mxu0
        %v857 = vadd.f32 0.0, %v856
        %858 = vdwg.mxu0
        %859 = vst.msk [vmem:[%s354] sm:$0xff] %vm367, %v854
        %860 = vst.msk [vmem:[%s354 + $0x8] sm:$0xff] %vm367, %v857
        %s861 = sand.u32 %s165, 1
        %s862 = scalar_lea.sflag [#allocation5], %s861
        %s863 = sand.u32 %s165, 1
        %s864 = smul.addr %s863, 16
        %s865 = scalar_lea.vmem [#allocation14], %s864
        // Predicated region
        $region69: #{tpu_custom_call.1} parent=43 // pred_check
          %p866 = pneg %p175
        $region70: #{tpu_custom_call.1} parent=43 // pred_check_branch
          %868 = sbr.rel (%p866) target = $region72
        $region71: #{tpu_custom_call.1} parent=43 // pred_region
          %s869 = smul.u32 2, %s26
          %871 = vsyncadd %s862, 0
          %s872 = smul.addr %s869, 8
          %s873 = scalar_lea.hbm %s6, %s872
          %s874 = sshll.u32 %s865, 4
          %s875 = int_to_ptr.vmem [resolvable:$true] %s874
          %s876 = sshll.u32 %s873, 4
          %s877 = int_to_ptr.hbm [resolvable:$true] %s876
          %882 = dma.vmem_to_hbm [thread:$0]  %s875, 256, %s877, %s862, 128, 128, 8
        $region72: #{tpu_custom_call.1} parent=43 // pred_fallthru
          _
      $region44: #{tpu_custom_call.1} parent=5 // pred_fallthru
        _
      %p883 = scmp.le.s32.totalorder 2, %s21
      // Predicated region
      $region73: #{tpu_custom_call.1} parent=5 // pred_check
        %p884 = pneg %p883
      $region74: #{tpu_custom_call.1} parent=5 // pred_check_branch
        %886 = sbr.rel (%p884) target = $region76
      $region75: #{tpu_custom_call.1} parent=5 // pred_region
        %s887 = ssub.s32 %s21, 2
        // Predicated region
        $region77: #{tpu_custom_call.1} parent=75 // pred_check
          %p888 = pneg %p181
        $region78: #{tpu_custom_call.1} parent=75 // pred_check_branch
          %890 = sbr.rel (%p888) target = $region80
        $region79: #{tpu_custom_call.1} parent=75 // pred_region
          %s891 = sand.u32 %s166, 1
          %s892 = scalar_lea.sflag [#allocation5], %s891
          %s893 = sand.u32 %s166, 1
          %s894 = smul.addr %s893, 16
          %s895 = scalar_lea.vmem [#allocation14], %s894
          %897 = dma.done %s892, 256
        $region80: #{tpu_custom_call.1} parent=75 // pred_fallthru
          _
      $region76: #{tpu_custom_call.1} parent=5 // pred_fallthru
        _
    $region6: #{tpu_custom_call.1} parent=1 // loop_footer
      %s25 = sadd.s32 1, %s21
    $region7: #{tpu_custom_call.1} parent=1 // loop_footer_branch
      %20 = sbr.rel target = $region3
    $region8: #{tpu_custom_call.1} parent=1 // loop_exit
      _
    %898 = vsyncpa [#allocation4], 1
    %s899 = scalar_lea.sflag [#allocation4], 1
    %900 = vsyncpa %s899, 1
    %901 = vsyncpa [#allocation7], 1
    %902 = vsyncpa [#allocation10], 1
    %903 = vsyncpa [#allocation13], 1
    %904 = vsyncpa [#allocation5], 1
    %s905 = scalar_lea.sflag [#allocation5], 1
    %906 = vsyncpa %s905, 1

</llo_original>
